<compile_context>
chip_gen: v7x
topology: tpu7x:2x2x1
jax: 0.10.0
libtpu: 0.0.40
codegen_flags: <defaults>
</compile_context>

<pallas_src>
import jax
import jax.numpy as jnp
from jax.experimental import pallas as pl
from jax.experimental.pallas import tpu as pltpu


def _round_up(x, m):
    return ((x + m - 1) // m) * m


def _cdiv(a, b):
    return (a + b - 1) // b


def _embed_mul_kernel(label_ref, z_ref, emb_ref, o_ref):
    # label_ref: (TB, 1)  int32 tile of labels
    # z_ref    : (TB, D)  tile of z
    # emb_ref  : (C,  D)  full embedding table, resident in VMEM
    # o_ref    : (TB, D)  output tile
    num_class = emb_ref.shape[0]

    # In-kernel clamp: the VMEM one-hot gather has no bounds check, and the
    # ragged tail block may contain uninitialized label values.
    labels = jnp.clip(label_ref[...], 0, num_class - 1)          # (TB, 1) int32
    tb = labels.shape[0]

    # One-hot gather on the MXU: one_hot(label) @ emb_table (exact in f32).
    class_iota = jax.lax.broadcasted_iota(jnp.int32, (tb, num_class), 1)
    one_hot = (class_iota == labels).astype(emb_ref.dtype)        # (TB, C)
    gathered = jnp.dot(one_hot, emb_ref[...],
                       preferred_element_type=jnp.float32)        # (TB, D) f32

    # Elementwise multiply in f32 (safe for bf16 inputs on v5e as well).
    o_ref[...] = (z_ref[...].astype(jnp.float32) * gathered).astype(o_ref.dtype)


def embedding_labeled_latent(z, label, emb_table, *, tile_b=1024):
    """out[b, :] = z[b, :] * emb_table[label[b], :]"""
    B, D = z.shape
    num_class, D2 = emb_table.shape
    assert D == D2

    table_bytes = num_class * D * emb_table.dtype.itemsize
    # Resident-table + one-hot gather only makes sense for small/medium tables.
    assert table_bytes <= 8 * 1024 * 1024, (
        "embedding table too large to keep resident in VMEM")
    # TODO(synk): add a per-row DMA gather path (scalar-prefetch labels +
    # pl.Element row index_map) for tables too large to keep resident in VMEM.

    label = label.astype(jnp.int32).reshape(B, 1)

    # Batch tile: multiple of 8 sublanes (f32), capped at the batch itself.
    TB = min(_round_up(int(tile_b), 8), _round_up(B, 8))
    # Ensure >= 2 grid steps when possible so "parallel" can shard across the
    # two TensorCores on v7x (negligible cost on single-TC chips).
    if _cdiv(B, TB) < 2 and TB >= 16:
        TB = _round_up(_cdiv(TB, 2), 8)
    grid = (_cdiv(B, TB),)

    itemsize = z.dtype.itemsize

    # Only raise the scoped-VMEM limit if the footprint would exceed the
    # smallest default (v5e: 16 MiB). Default tile sizes never trigger this.
    est_vmem = (2 * 2 * TB * D * itemsize            # z + out, double-buffered
                + 2 * table_bytes                    # table (double-buffered)
                + TB * _round_up(num_class, 128) * 4 # one-hot scratch
                + 2 * TB * 4)                        # label tiles
    vmem_limit = None
    if est_vmem > 12 * 1024 * 1024:
        vmem_limit = min(2 * est_vmem, 64 * 1024 * 1024)

    grid_spec = pltpu.PrefetchScalarGridSpec(
        num_scalar_prefetch=0,
        grid=grid,
        in_specs=[
            # labels: one (TB, 1) tile per grid step
            pl.BlockSpec((TB, 1), lambda i: (i, 0)),
            # z: one (TB, D) tile per grid step
            pl.BlockSpec((TB, D), lambda i: (i, 0)),
            # full embedding table, same block every step (stays in VMEM)
            pl.BlockSpec((num_class, D), lambda i: (0, 0)),
        ],
        out_specs=pl.BlockSpec((TB, D), lambda i: (i, 0)),
    )

    cost = pl.CostEstimate(
        flops=2 * B * num_class * D,
        transcendentals=0,
        bytes_accessed=2 * B * D * itemsize + table_bytes + B * 4,
    )

    out = pl.pallas_call(
        _embed_mul_kernel,
        out_shape=jax.ShapeDtypeStruct((B, D), z.dtype),
        grid_spec=grid_spec,
        compiler_params=pltpu.CompilerParams(
            dimension_semantics=("parallel",),
            vmem_limit_bytes=vmem_limit,
        ),
        cost_estimate=cost,
    )(label, z, emb_table)

    return out


if __name__ == "__main__":
    latent_dim = 128
    num_class = 10

    key = jax.random.PRNGKey(0)
    k_z, k_emb, k_lab, k_z2, k_lab2 = jax.random.split(key, 5)

    # nn.Embedding default init: N(0, 1)
    emb_table = jax.random.normal(k_emb, (num_class, latent_dim), dtype=jnp.float32)

    # Case 1: small batch (single tile).
    B1 = 8
    z1 = jax.random.normal(k_z, (B1, latent_dim), dtype=jnp.float32)
    lab1 = jax.random.randint(k_lab, (B1,), 0, num_class, dtype=jnp.int32)
    out1 = jax.block_until_ready(embedding_labeled_latent(z1, lab1, emb_table))
    ref1 = z1 * emb_table[lab1]
    assert out1.shape == (B1, latent_dim)
    assert jnp.allclose(out1, ref1, atol=1e-6, rtol=1e-6)

    # Case 2: ragged batch (B % TB != 0) — exercises the partial tail block
    # with no wrapper-side pad or output slice.
    B2 = 300
    z2 = jax.random.normal(k_z2, (B2, latent_dim), dtype=jnp.float32)
    lab2 = jax.random.randint(k_lab2, (B2,), 0, num_class, dtype=jnp.int32)
    out2 = jax.block_until_ready(
        embedding_labeled_latent(z2, lab2, emb_table, tile_b=128))
    ref2 = z2 * emb_table[lab2]
    assert out2.shape == (B2, latent_dim)
    assert jnp.allclose(out2, ref2, atol=1e-6, rtol=1e-6)

    print("KERNEL_OK")
</pallas_src>

<mosaic_0001>
module attributes {stable_mosaic.version = 11 : i64} {
  func.func @_embed_mul_kernel(%arg0: i32, %arg1: memref<8x1xi32, #tpu.memory_space<vmem>>, %arg2: memref<8x128xf32, #tpu.memory_space<vmem>>, %arg3: memref<10x128xf32, #tpu.memory_space<vmem>>, %arg4: memref<8x128xf32, #tpu.memory_space<vmem>>) attributes {dimension_semantics = [#tpu.dimension_semantics<parallel>], iteration_bounds = array<i64: 1>, scalar_prefetch = 0 : i64, scratch_operands = 0 : i64, tpu.core_type = #tpu.core_type<tc>, window_params = [{transform_indices = @transform_0, window_bounds = array<i64: 8, 1>}, {transform_indices = @transform_1, window_bounds = array<i64: 8, 128>}, {pipeline_mode = #tpu.pipeline_mode<synchronous>, transform_indices = @transform_2, window_bounds = array<i64: 10, 128>}, {transform_indices = @transform_3, window_bounds = array<i64: 8, 128>}]} {
    %c0 = arith.constant 0 : index
    %c0_0 = arith.constant 0 : index
    %0 = vector.load %arg1[%c0, %c0_0] : memref<8x1xi32, #tpu.memory_space<vmem>>, vector<8x1xi32>
    %c0_i32 = arith.constant 0 : i32
    %c9_i32 = arith.constant 9 : i32
    %1 = vector.broadcast %c0_i32 : i32 to vector<8x1xi32>
    %2 = arith.maxsi %1, %0 : vector<8x1xi32>
    %3 = vector.broadcast %c9_i32 : i32 to vector<8x1xi32>
    %4 = arith.minsi %3, %2 : vector<8x1xi32>
    %5 = tpu.iota {dimensions = array<i32: 1>} : vector<8x10xi32>
    %6 = vector.broadcast %4 : vector<8x1xi32> to vector<8x10xi32>
    %7 = arith.cmpi eq, %5, %6 : vector<8x10xi32>
    %8 = arith.extui %7 : vector<8x10xi1> to vector<8x10xi32>
    %9 = arith.sitofp %8 : vector<8x10xi32> to vector<8x10xf32>
    %c0_1 = arith.constant 0 : index
    %c0_2 = arith.constant 0 : index
    %10 = vector.load %arg3[%c0_1, %c0_2] : memref<10x128xf32, #tpu.memory_space<vmem>>, vector<10x128xf32>
    %cst = arith.constant dense<0.000000e+00> : vector<8x128xf32>
    %11 = tpu.matmul %9, %10, %cst {dimension_numbers = #tpu.dot_dimension_numbers<[1], [0], [0], [1], [0, 0, 1, 1], [], []>} : vector<8x10xf32>, vector<10x128xf32>, vector<8x128xf32> -> vector<8x128xf32>
    %c0_3 = arith.constant 0 : index
    %c0_4 = arith.constant 0 : index
    %12 = vector.load %arg2[%c0_3, %c0_4] : memref<8x128xf32, #tpu.memory_space<vmem>>, vector<8x128xf32>
    %13 = arith.mulf %12, %11 : vector<8x128xf32>
    %c0_5 = arith.constant 0 : index
    %c0_6 = arith.constant 0 : index
    %14 = vector.load %arg4[%c0_5, %c0_6] : memref<8x128xf32, #tpu.memory_space<vmem>>, vector<8x128xf32>
    tpu.vector_store %arg4[%c0_5, %c0_6], %13 {strides = array<i32>} : memref<8x128xf32, #tpu.memory_space<vmem>>, vector<8x128xf32>,
    return
  }
  func.func @transform_0(%arg0: i32) -> (i32, i32) {
    %c0_i32 = arith.constant 0 : i32
    %c0_i32_0 = arith.constant 0 : i32
    return %arg0, %c0_i32 : i32, i32
  }
  func.func @transform_1(%arg0: i32) -> (i32, i32) {
    %c0_i32 = arith.constant 0 : i32
    %c0_i32_0 = arith.constant 0 : i32
    return %arg0, %c0_i32 : i32, i32
  }
  func.func @transform_2(%arg0: i32) -> (i32, i32) {
    %c0_i32 = arith.constant 0 : i32
    %c0_i32_0 = arith.constant 0 : i32
    %c0_i32_1 = arith.constant 0 : i32
    return %c0_i32, %c0_i32_0 : i32, i32
  }
  func.func @transform_3(%arg0: i32) -> (i32, i32) {
    %c0_i32 = arith.constant 0 : i32
    %c0_i32_0 = arith.constant 0 : i32
    return %arg0, %c0_i32 : i32, i32
  }
}

</mosaic_0001>

<llo_original>
// kernel: tpu_custom_call.1
$region0: #{tpu_custom_call.1}
  #allocation0 [shape = 'u32[]', space=smem, size = 0x4, offset = 0x4, fixed_abs, tag = 'smem constant byte address 0x4 - core index']
  #allocation1 [shape = 'u32[144,128]{1,0:T(1,128)}', space=vmem, size = 0x12000, scoped, tag = 'internal scratch']
  %s0 = inlined_call_operand.vmem [shape: s32[8,1], index: 0, kind: input, shape index: {}]
  %s1 = inlined_call_operand.hbm [shape: f32[8,128], index: 1, kind: input, shape index: {}]
  %s2 = inlined_call_operand.vmem [shape: f32[10,128], index: 2, kind: input, shape index: {}]
  %s3 = inlined_call_operand.hbm [shape: f32[8,128], index: 3, kind: output, shape index: {}]
  %s4 = sld [smem:[#allocation0]]
  $region26: #{tpu_custom_call.1} parent=0
    _
  %s6 = ssub.s32 1, %s4
  %s7 = scalar_select 0, %s6, %s4
  $region1: #{tpu_custom_call.1} parent=0
    #allocation2 [shape = 'u8[4096]{0}', space=vmem, size = 0x1000, scoped, tag = 'input window, operand 1, single buffered']
    #allocation3 [shape = 's32[1]{0}', space=sflag, size = 0x4, scoped, tag = 'scoped memory for tpu_custom_call.1']
    #allocation4 [shape = 's32[1]{0}', space=sflag, size = 0x4, scoped, tag = 'scoped memory for tpu_custom_call.1']
    #allocation5 [shape = 'u8[4096]{0}', space=vmem, size = 0x1000, scoped, tag = 'output window, operand 0, single buffered']
    %8 = vsyncpa [#allocation3], 0
    %9 = vsyncpa [#allocation4], 0
    // Predicated region
    $region2: #{tpu_custom_call.1} parent=1 // pred_check
      _
    $region3: #{tpu_custom_call.1} parent=1 // pred_check_branch
      %11 = sbr.rel (0) target = $region5
    $region4: #{tpu_custom_call.1} parent=1 // pred_region
      _
    $region5: #{tpu_custom_call.1} parent=1 // pred_fallthru
      _
    // Predicated region
    $region6: #{tpu_custom_call.1} parent=1 // pred_check
      _
    $region7: #{tpu_custom_call.1} parent=1 // pred_check_branch
      %13 = sbr.rel (0) target = $region9
    $region8: #{tpu_custom_call.1} parent=1 // pred_region
      %s15 = ssub.s32 128, 128
      %16 = vsyncadd [#allocation3], %s15
      %s18 = sshll.u32 [#allocation2], 4
      %s19 = int_to_ptr.vmem [resolvable:$true] %s18
      %21 = dma.hbm_to_vmem [thread:$0]  %s1, 128, %s19, [#allocation3]
    $region9: #{tpu_custom_call.1} parent=1 // pred_fallthru
      _
    // Predicated region
    $region10: #{tpu_custom_call.1} parent=1 // pred_check
      _
    $region11: #{tpu_custom_call.1} parent=1 // pred_check_branch
      %23 = sbr.rel (0) target = $region13
    $region12: #{tpu_custom_call.1} parent=1 // pred_region
      _
    $region13: #{tpu_custom_call.1} parent=1 // pred_fallthru
      _
    // Predicated region
    $region14: #{tpu_custom_call.1} parent=1 // pred_check
      _
    $region15: #{tpu_custom_call.1} parent=1 // pred_check_branch
      %25 = sbr.rel (0) target = $region17
    $region16: #{tpu_custom_call.1} parent=1 // pred_region
      %26 = dma.done [#allocation3], 128
    $region17: #{tpu_custom_call.1} parent=1 // pred_fallthru
      _
    %v27 = vld [vmem:[%s0] sm:$0xff]
    %vm28 = vcmp.gt.s32.totalorder %v27, 0
    %v29 = vsel %vm28, %v27, 0
    %vm30 = vcmp.lt.s32.totalorder %v29, 9
    %v31 = vsel %vm30, %v29, 9
    %v32 = vlaneseq
    %v33 = vand.u32 %v32, 127
    %34 = vset.pattern.permute.xlu0 0
    %35 = vperm.xlu0 %34, %v31
    %v36 = vpop.permute.xlu0 %35
    %vm37 = vcmp.eq.s32.totalorder %v33, %v36
    %v38 = vsel %vm37, 1, 0
    %v39 = vcvt.s32.f32 %v38
    %v40 = vld [vmem:[%s2] sm:$0xff]
    %v41 = vld [vmem:[%s2 + $0x8] sm:$0x3]
    %vm42 = vcmask 80896
    %v44 = vsel %vm42, %v39, 0
    %vm46 = vcmask 1041408
    %v48 = vsel %vm46, %v41, 0
    %50 = vmatprep.subr.mxu0 0.0
    %51 = vmatpush1.msra.mxu0 %v40
    %52 = vmatprep.subr.mxu0 0.0
    %53 = vmatpush1.msra.mxu0 %v48
    %54 = vmatprep.subr.mxu0 0.0
    %55 = vmatpush1.msra.mxu0 0.0
    %56 = vmatprep.subr.mxu0 0.0
    %57 = vmatpush1.msra.mxu0 0.0
    %58 = vmatprep.subr.mxu0 0.0
    %59 = vmatpush1.msra.mxu0 0.0
    %60 = vmatprep.subr.mxu0 0.0
    %61 = vmatpush1.msra.mxu0 0.0
    %62 = vmatprep.subr.mxu0 0.0
    %63 = vmatpush1.msra.mxu0 0.0
    %64 = vmatprep.subr.mxu0 0.0
    %65 = vmatpush1.msra.mxu0 0.0
    %66 = vmatprep.subr.mxu0 0.0
    %67 = vmatpush1.msra.mxu0 0.0
    %68 = vmatprep.subr.mxu0 0.0
    %69 = vmatpush1.msra.mxu0 0.0
    %70 = vmatprep.subr.mxu0 0.0
    %71 = vmatpush1.msra.mxu0 0.0
    %72 = vmatprep.subr.mxu0 0.0
    %73 = vmatpush1.msra.mxu0 0.0
    %74 = vmatprep.subr.mxu0 0.0
    %75 = vmatpush1.msra.mxu0 0.0
    %76 = vmatprep.subr.mxu0 0.0
    %77 = vmatpush1.msra.mxu0 0.0
    %78 = vmatprep.subr.mxu0 0.0
    %79 = vmatpush1.msra.mxu0 0.0
    %80 = vmatprep.subr.mxu0 0.0
    %81 = vmatpush1.msra.mxu0 0.0
    %82 = vmatprep.subr.mxu0 0.0
    %83 = vmatpush1.msra.mxu0 0.0
    %84 = vmatprep.subr.mxu0 0.0
    %85 = vmatpush1.msra.mxu0 0.0
    %86 = vmatprep.subr.mxu0 0.0
    %87 = vmatpush1.msra.mxu0 0.0
    %88 = vmatprep.subr.mxu0 0.0
    %89 = vmatpush1.msra.mxu0 0.0
    %90 = vmatprep.subr.mxu0 0.0
    %91 = vmatpush1.msra.mxu0 0.0
    %92 = vmatprep.subr.mxu0 0.0
    %93 = vmatpush1.msra.mxu0 0.0
    %94 = vmatprep.subr.mxu0 0.0
    %95 = vmatpush1.msra.mxu0 0.0
    %96 = vmatprep.subr.mxu0 0.0
    %97 = vmatpush1.msra.mxu0 0.0
    %98 = vmatprep.subr.mxu0 0.0
    %99 = vmatpush1.msra.mxu0 0.0
    %100 = vmatprep.subr.mxu0 0.0
    %101 = vmatpush1.msra.mxu0 0.0
    %102 = vmatprep.subr.mxu0 0.0
    %103 = vmatpush1.msra.mxu0 0.0
    %104 = vmatprep.subr.mxu0 0.0
    %105 = vmatpush1.msra.mxu0 0.0
    %106 = vmatprep.subr.mxu0 0.0
    %107 = vmatpush1.msra.mxu0 0.0
    %108 = vmatprep.subr.mxu0 0.0
    %109 = vmatpush1.msra.mxu0 0.0
    %110 = vmatprep.subr.mxu0 0.0
    %111 = vmatpush1.msra.mxu0 0.0
    %112 = vmatprep.subr.mxu0 0.0
    %113 = vmatpush1.msra.mxu0 0.0
    %114 = vmatprep.mubr.f32.mxu0 0.0
    %115 = vmatmul.mubr.f32.gmra.mrb[0].mxu0 %v44
    %v116 = vpop.f32.mrb[0].mxu0
    %v117 = vadd.f32 0.0, %v116
    %v118 = vpop.f32.mrb[0].mxu0
    %119 = vdwg.mxu0
    %v120 = vld [vmem:[#allocation2] sm:$0xff]
    %v121 = vmul.f32 %v120, %v117
    %122 = vst [vmem:[#allocation5] sm:$0xff] %v121
    // Predicated region
    $region18: #{tpu_custom_call.1} parent=1 // pred_check
      _
    $region19: #{tpu_custom_call.1} parent=1 // pred_check_branch
      %124 = sbr.rel (0) target = $region21
    $region20: #{tpu_custom_call.1} parent=1 // pred_region
      %s126 = ssub.s32 128, 128
      %127 = vsyncadd [#allocation4], %s126
      %s129 = sshll.u32 [#allocation5], 4
      %s130 = int_to_ptr.vmem [resolvable:$true] %s129
      %132 = dma.vmem_to_hbm [thread:$0]  %s130, 128, %s3, [#allocation4]
    $region21: #{tpu_custom_call.1} parent=1 // pred_fallthru
      _
    // Predicated region
    $region22: #{tpu_custom_call.1} parent=1 // pred_check
      _
    $region23: #{tpu_custom_call.1} parent=1 // pred_check_branch
      %134 = sbr.rel (0) target = $region25
    $region24: #{tpu_custom_call.1} parent=1 // pred_region
      %135 = dma.done [#allocation4], 128
    $region25: #{tpu_custom_call.1} parent=1 // pred_fallthru
      _
    %136 = vsyncpa [#allocation3], 1
    %137 = vsyncpa [#allocation4], 1

</llo_original>
